<compile_context>
chip_gen: v5e
topology: v5e:2x2
jax: 0.10.0
libtpu: 0.0.40
codegen_flags: <defaults>
</compile_context>

<pallas_src>
import functools

import jax
import jax.numpy as jnp
from jax.experimental import pallas as pl
from jax.experimental.pallas import tpu as pltpu

BN_EPS = 1e-5
LANE = 128

# Row indices inside the packed bias / BatchNorm vector slab.
_ROW_BE1, _ROW_G1, _ROW_B1, _ROW_BE2 = 0, 1, 2, 3
_ROW_BF1, _ROW_G2, _ROW_B2 = 4, 5, 6
_ROW_BD1, _ROW_G3, _ROW_B3 = 7, 8, 9
_ROW_BHEAD, _ROW_BF2, _ROW_BD2 = 10, 11, 12
_VEC_ROWS = 16  # padded to a multiple of 8 sublanes


def _round_up(n, m):
    return ((n + m - 1) // m) * m


def _mm(a, w):
    # MXU matmul with f32 accumulation; cast the activation to the weight
    # storage dtype (bf16 on v6e/v7x if chosen) so both operands take the
    # native MXU path.  No-op cast when weights are f32.
    return jnp.dot(a.astype(w.dtype), w, preferred_element_type=jnp.float32)


def _bn_train(a, gamma, beta):
    # BatchNorm1d training mode: batch mean, biased batch variance, eps=1e-5.
    mean = jnp.mean(a, axis=0, keepdims=True)
    diff = a - mean  # hoisted: reused for both var and normalization
    var = jnp.mean(diff * diff, axis=0, keepdims=True)
    return gamma * diff * jax.lax.rsqrt(var + BN_EPS) + beta


def cvae_kernel(
    # data
    x_ref, y_ref, eps_ref,
    # weights (padded / fused)
    w_enc1_ref, w_enc2_ref, w_fwd1_ref, w_fwd2_ref,
    w_head_ref, w_dec1_ref, w_dec2_ref,
    # packed bias / BN vector slab (f32)
    vec_ref,
    # fused lane-dense output slab
    out_ref,
    *, ip, hp, lp, fp,
):
    x = x_ref[...]      # [B, IP] f32, zero-padded lanes
    y = y_ref[...]      # [B, FP]
    eps = eps_ref[...]  # [B, LP]

    # Static slices of the packed vector slab (zero-cost ref views).
    be1 = vec_ref[_ROW_BE1:_ROW_BE1 + 1, 0:hp]
    g1 = vec_ref[_ROW_G1:_ROW_G1 + 1, 0:hp]
    b1 = vec_ref[_ROW_B1:_ROW_B1 + 1, 0:hp]
    be2 = vec_ref[_ROW_BE2:_ROW_BE2 + 1, 0:hp]
    bf1 = vec_ref[_ROW_BF1:_ROW_BF1 + 1, 0:hp]
    g2 = vec_ref[_ROW_G2:_ROW_G2 + 1, 0:hp]
    b2 = vec_ref[_ROW_B2:_ROW_B2 + 1, 0:hp]
    bd1 = vec_ref[_ROW_BD1:_ROW_BD1 + 1, 0:hp]
    g3 = vec_ref[_ROW_G3:_ROW_G3 + 1, 0:hp]
    b3 = vec_ref[_ROW_B3:_ROW_B3 + 1, 0:hp]
    b_head = vec_ref[_ROW_BHEAD:_ROW_BHEAD + 1, 0:2 * lp]
    b_f2 = vec_ref[_ROW_BF2:_ROW_BF2 + 1, 0:fp]
    b_d2 = vec_ref[_ROW_BD2:_ROW_BD2 + 1, 0:ip]

    # ---- encoder: Linear -> ReLU -> BatchNorm -> Linear -> ReLU ----
    h1 = jnp.maximum(_mm(x, w_enc1_ref[...]) + be1, 0.0)
    h1 = _bn_train(h1, g1, b1)
    h = jnp.maximum(_mm(h1, w_enc2_ref[...]) + be2, 0.0)

    # ---- forward_net: Linear -> ReLU -> BatchNorm -> Linear ----
    f1 = jnp.maximum(_mm(h, w_fwd1_ref[...]) + bf1, 0.0)
    f1 = _bn_train(f1, g2, b2)
    ypred = _mm(f1, w_fwd2_ref[...]) + b_f2              # [B, FP]

    # ---- fused mu/logvar heads + reparameterize ----
    mulv = _mm(h, w_head_ref[...]) + b_head              # [B, 2*LP] = [mu | logvar]
    mu = mulv[:, 0:lp]
    logvar = mulv[:, lp:2 * lp]
    z = mu + eps * jnp.exp(0.5 * logvar)                 # [B, LP]

    # ---- decoder: Linear(concat(z, y)) == z @ W[:LP] + y @ W[LP:LP+FP] + b ----
    d1 = _mm(z, w_dec1_ref[0:lp, :]) + _mm(y, w_dec1_ref[lp:lp + fp, :]) + bd1
    d1 = jnp.maximum(d1, 0.0)
    d1 = _bn_train(d1, g3, b3)
    recon = _mm(d1, w_dec2_ref[...]) + b_d2              # [B, IP]

    # ---- fused lane-dense output slab: [recon | mu | logvar | ypred] ----
    out_ref[:, 0:ip] = recon
    out_ref[:, ip:ip + 2 * lp] = mulv
    out_ref[:, ip + 2 * lp:ip + 2 * lp + fp] = ypred


def init_raw_params(key, input_size, latent_dim, hidden_dim, forward_dim):
    """PyTorch-style uniform(+-1/sqrt(fan_in)) init; weights stored [in, out]."""
    keys = iter(jax.random.split(key, 32))

    def lin(fan_in, fan_out):
        bound = 1.0 / float(fan_in) ** 0.5
        w = jax.random.uniform(next(keys), (fan_in, fan_out), jnp.float32, -bound, bound)
        b = jax.random.uniform(next(keys), (fan_out,), jnp.float32, -bound, bound)
        return w, b

    p = {}
    p["enc1_w"], p["enc1_b"] = lin(input_size, hidden_dim)
    p["bn1_g"], p["bn1_b"] = jnp.ones((hidden_dim,), jnp.float32), jnp.zeros((hidden_dim,), jnp.float32)
    p["enc2_w"], p["enc2_b"] = lin(hidden_dim, hidden_dim)
    p["fwd1_w"], p["fwd1_b"] = lin(hidden_dim, hidden_dim)
    p["bn2_g"], p["bn2_b"] = jnp.ones((hidden_dim,), jnp.float32), jnp.zeros((hidden_dim,), jnp.float32)
    p["fwd2_w"], p["fwd2_b"] = lin(hidden_dim, forward_dim)
    p["mu_w"], p["mu_b"] = lin(hidden_dim, latent_dim)
    p["lv_w"], p["lv_b"] = lin(hidden_dim, latent_dim)
    p["dec1_w"], p["dec1_b"] = lin(latent_dim + forward_dim, hidden_dim)
    p["bn3_g"], p["bn3_b"] = jnp.ones((hidden_dim,), jnp.float32), jnp.zeros((hidden_dim,), jnp.float32)
    p["dec2_w"], p["dec2_b"] = lin(hidden_dim, input_size)
    return p


def pack_params(raw, input_size, latent_dim, hidden_dim, forward_dim,
                param_dtype=jnp.float32):
    """Pad / fuse raw params into lane-dense kernel inputs (done once)."""
    ip = _round_up(input_size, LANE)
    hp = _round_up(hidden_dim, LANE)
    lp = _round_up(latent_dim, LANE)
    fp = _round_up(forward_dim, LANE)
    slab_w = max(hp, 2 * lp, fp, ip)

    def pad_w(w, rows, cols):
        r, c = w.shape
        return jnp.pad(w, ((0, rows - r), (0, cols - c))).astype(param_dtype)

    w_enc1 = pad_w(raw["enc1_w"], ip, hp)
    w_enc2 = pad_w(raw["enc2_w"], hp, hp)
    w_fwd1 = pad_w(raw["fwd1_w"], hp, hp)
    w_fwd2 = pad_w(raw["fwd2_w"], hp, fp)

    # Fused mu/logvar head weight: [HP, 2*LP].
    w_head = jnp.zeros((hidden_dim, 2 * lp), jnp.float32)
    w_head = w_head.at[:, 0:latent_dim].set(raw["mu_w"])
    w_head = w_head.at[:, lp:lp + latent_dim].set(raw["lv_w"])
    w_head = jnp.pad(w_head, ((0, hp - hidden_dim), (0, 0))).astype(param_dtype)

    # Decoder first Linear over concat(z, y): one stacked weight [LP+FP, HP].
    w_dec1 = jnp.zeros((lp + fp, hidden_dim), jnp.float32)
    w_dec1 = w_dec1.at[0:latent_dim, :].set(raw["dec1_w"][:latent_dim])
    w_dec1 = w_dec1.at[lp:lp + forward_dim, :].set(raw["dec1_w"][latent_dim:])
    w_dec1 = jnp.pad(w_dec1, ((0, 0), (0, hp - hidden_dim))).astype(param_dtype)

    w_dec2 = pad_w(raw["dec2_w"], hp, ip)

    # One f32 slab holding all bias / BatchNorm vectors.
    vec = jnp.zeros((_VEC_ROWS, slab_w), jnp.float32)

    def set_row(v, row, val):
        return v.at[row, 0:val.shape[0]].set(val)

    vec = set_row(vec, _ROW_BE1, raw["enc1_b"])
    vec = set_row(vec, _ROW_G1, raw["bn1_g"])
    vec = set_row(vec, _ROW_B1, raw["bn1_b"])
    vec = set_row(vec, _ROW_BE2, raw["enc2_b"])
    vec = set_row(vec, _ROW_BF1, raw["fwd1_b"])
    vec = set_row(vec, _ROW_G2, raw["bn2_g"])
    vec = set_row(vec, _ROW_B2, raw["bn2_b"])
    vec = set_row(vec, _ROW_BD1, raw["dec1_b"])
    vec = set_row(vec, _ROW_G3, raw["bn3_g"])
    vec = set_row(vec, _ROW_B3, raw["bn3_b"])
    b_head = jnp.zeros((2 * lp,), jnp.float32)
    b_head = b_head.at[0:latent_dim].set(raw["mu_b"])
    b_head = b_head.at[lp:lp + latent_dim].set(raw["lv_b"])
    vec = set_row(vec, _ROW_BHEAD, b_head)
    vec = set_row(vec, _ROW_BF2, raw["fwd2_b"])
    vec = set_row(vec, _ROW_BD2, raw["dec2_b"])

    return (w_enc1, w_enc2, w_fwd1, w_fwd2, w_head, w_dec1, w_dec2, vec)


@functools.partial(jax.jit, static_argnames=("input_size", "latent_dim", "forward_dim"))
def cvae_forward(x, y, eps_noise, packed_params, *, input_size, latent_dim, forward_dim):
    (w_enc1, w_enc2, w_fwd1, w_fwd2, w_head, w_dec1, w_dec2, vec) = packed_params
    batch = x.shape[0]
    ip, hp = w_enc1.shape
    lp = w_head.shape[1] // 2
    fp = w_fwd2.shape[1]
    out_w = ip + 2 * lp + fp

    # Lane-dense zero-padding of the data (layout plumbing, not compute).
    x_p = jnp.pad(x.astype(jnp.float32), ((0, 0), (0, ip - input_size)))
    y_p = jnp.pad(y.astype(jnp.float32), ((0, 0), (0, fp - forward_dim)))
    eps_p = jnp.pad(eps_noise.astype(jnp.float32), ((0, 0), (0, lp - latent_dim)))

    inputs = (x_p, y_p, eps_p,
              w_enc1, w_enc2, w_fwd1, w_fwd2, w_head, w_dec1, w_dec2, vec)

    flops = 2 * batch * (ip * hp + hp * hp + hp * hp + hp * fp
                         + hp * 2 * lp + (lp + fp) * hp + hp * ip)
    transcendentals = batch * 2 * lp + 3 * hp  # exp for reparam + BN rsqrt (approx)
    bytes_accessed = sum(int(a.size) * a.dtype.itemsize for a in inputs) + batch * out_w * 4

    vmem = pl.BlockSpec(memory_space=pltpu.MemorySpace.VMEM)
    kernel = functools.partial(cvae_kernel, ip=ip, hp=hp, lp=lp, fp=fp)

    out = pl.pallas_call(
        kernel,
        out_shape=jax.ShapeDtypeStruct((batch, out_w), jnp.float32),
        in_specs=[vmem] * len(inputs),
        out_specs=vmem,
        compiler_params=pltpu.CompilerParams(vmem_limit_bytes=32 * 1024 * 1024),
        cost_estimate=pl.CostEstimate(flops=flops,
                                      transcendentals=transcendentals,
                                      bytes_accessed=bytes_accessed),
    )(*inputs)

    # Slice the fused lane-dense output slab back into the four tensors.
    recon = out[:, 0:input_size]
    mu = out[:, ip:ip + latent_dim]
    logvar = out[:, ip + lp:ip + lp + latent_dim]
    y_pred = out[:, ip + 2 * lp:ip + 2 * lp + forward_dim]
    return recon, mu, logvar, y_pred


if __name__ == "__main__":
    batch = 8
    input_size = 16
    latent_dim = 4
    hidden_dim = 32
    forward_dim = 3

    key = jax.random.PRNGKey(0)
    k_x, k_y, k_eps, k_p = jax.random.split(key, 4)

    x = jax.random.normal(k_x, (batch, input_size), jnp.float32)
    y = jax.random.normal(k_y, (batch, forward_dim), jnp.float32)
    # Reparameterization noise (torch.randn_like equivalent) drawn outside.
    eps_noise = jax.random.normal(k_eps, (batch, latent_dim), jnp.float32)

    raw = init_raw_params(k_p, input_size, latent_dim, hidden_dim, forward_dim)
    # On v6e/v7x, pass param_dtype=jnp.bfloat16 to halve weight DMA and use
    # the bf16 MXU path (f32 accumulation is kept inside the kernel).
    packed = pack_params(raw, input_size, latent_dim, hidden_dim, forward_dim,
                         param_dtype=jnp.float32)

    recon, mu, logvar, y_pred = cvae_forward(
        x, y, eps_noise, packed,
        input_size=input_size, latent_dim=latent_dim, forward_dim=forward_dim)
    jax.block_until_ready((recon, mu, logvar, y_pred))

    assert recon.shape == (batch, input_size)
    assert mu.shape == (batch, latent_dim)
    assert logvar.shape == (batch, latent_dim)
    assert y_pred.shape == (batch, forward_dim)
    assert bool(jnp.all(jnp.isfinite(recon)))

    print("KERNEL_OK")
</pallas_src>

<mosaic_0001>
module attributes {stable_mosaic.version = 11 : i64} {
  func.func @cvae_kernel(%arg0: memref<8x128xf32, #tpu.memory_space<vmem>>, %arg1: memref<8x128xf32, #tpu.memory_space<vmem>>, %arg2: memref<8x128xf32, #tpu.memory_space<vmem>>, %arg3: memref<128x128xf32, #tpu.memory_space<vmem>>, %arg4: memref<128x128xf32, #tpu.memory_space<vmem>>, %arg5: memref<128x128xf32, #tpu.memory_space<vmem>>, %arg6: memref<128x128xf32, #tpu.memory_space<vmem>>, %arg7: memref<128x256xf32, #tpu.memory_space<vmem>>, %arg8: memref<256x128xf32, #tpu.memory_space<vmem>>, %arg9: memref<128x128xf32, #tpu.memory_space<vmem>>, %arg10: memref<16x256xf32, #tpu.memory_space<vmem>>, %arg11: memref<8x512xf32, #tpu.memory_space<vmem>>) attributes {dimension_semantics = [], scalar_prefetch = 0 : i64, scratch_operands = 0 : i64, tpu.core_type = #tpu.core_type<tc>} {
    %c0 = arith.constant 0 : index
    %c0_0 = arith.constant 0 : index
    %0 = vector.load %arg0[%c0, %c0_0] : memref<8x128xf32, #tpu.memory_space<vmem>>, vector<8x128xf32>
    %c0_1 = arith.constant 0 : index
    %c0_2 = arith.constant 0 : index
    %1 = vector.load %arg1[%c0_1, %c0_2] : memref<8x128xf32, #tpu.memory_space<vmem>>, vector<8x128xf32>
    %c0_3 = arith.constant 0 : index
    %c0_4 = arith.constant 0 : index
    %2 = vector.load %arg2[%c0_3, %c0_4] : memref<8x128xf32, #tpu.memory_space<vmem>>, vector<8x128xf32>
    %c0_5 = arith.constant 0 : index
    %c0_6 = arith.constant 0 : index
    %3 = vector.load %arg10[%c0_5, %c0_6] : memref<16x256xf32, #tpu.memory_space<vmem>>, vector<1x128xf32>
    %c1 = arith.constant 1 : index
    %c0_7 = arith.constant 0 : index
    %4 = vector.load %arg10[%c1, %c0_7] : memref<16x256xf32, #tpu.memory_space<vmem>>, vector<1x128xf32>
    %c2 = arith.constant 2 : index
    %c0_8 = arith.constant 0 : index
    %5 = vector.load %arg10[%c2, %c0_8] : memref<16x256xf32, #tpu.memory_space<vmem>>, vector<1x128xf32>
    %c3 = arith.constant 3 : index
    %c0_9 = arith.constant 0 : index
    %6 = vector.load %arg10[%c3, %c0_9] : memref<16x256xf32, #tpu.memory_space<vmem>>, vector<1x128xf32>
    %c4 = arith.constant 4 : index
    %c0_10 = arith.constant 0 : index
    %7 = vector.load %arg10[%c4, %c0_10] : memref<16x256xf32, #tpu.memory_space<vmem>>, vector<1x128xf32>
    %c5 = arith.constant 5 : index
    %c0_11 = arith.constant 0 : index
    %8 = vector.load %arg10[%c5, %c0_11] : memref<16x256xf32, #tpu.memory_space<vmem>>, vector<1x128xf32>
    %c6 = arith.constant 6 : index
    %c0_12 = arith.constant 0 : index
    %9 = vector.load %arg10[%c6, %c0_12] : memref<16x256xf32, #tpu.memory_space<vmem>>, vector<1x128xf32>
    %c7 = arith.constant 7 : index
    %c0_13 = arith.constant 0 : index
    %10 = vector.load %arg10[%c7, %c0_13] : memref<16x256xf32, #tpu.memory_space<vmem>>, vector<1x128xf32>
    %c8 = arith.constant 8 : index
    %c0_14 = arith.constant 0 : index
    %11 = vector.load %arg10[%c8, %c0_14] : memref<16x256xf32, #tpu.memory_space<vmem>>, vector<1x128xf32>
    %c9 = arith.constant 9 : index
    %c0_15 = arith.constant 0 : index
    %12 = vector.load %arg10[%c9, %c0_15] : memref<16x256xf32, #tpu.memory_space<vmem>>, vector<1x128xf32>
    %c10 = arith.constant 10 : index
    %c0_16 = arith.constant 0 : index
    %13 = vector.load %arg10[%c10, %c0_16] : memref<16x256xf32, #tpu.memory_space<vmem>>, vector<1x256xf32>
    %c11 = arith.constant 11 : index
    %c0_17 = arith.constant 0 : index
    %14 = vector.load %arg10[%c11, %c0_17] : memref<16x256xf32, #tpu.memory_space<vmem>>, vector<1x128xf32>
    %c12 = arith.constant 12 : index
    %c0_18 = arith.constant 0 : index
    %15 = vector.load %arg10[%c12, %c0_18] : memref<16x256xf32, #tpu.memory_space<vmem>>, vector<1x128xf32>
    %c0_19 = arith.constant 0 : index
    %c0_20 = arith.constant 0 : index
    %16 = vector.load %arg3[%c0_19, %c0_20] : memref<128x128xf32, #tpu.memory_space<vmem>>, vector<128x128xf32>
    %cst = arith.constant dense<0.000000e+00> : vector<8x128xf32>
    %17 = tpu.matmul %0, %16, %cst {dimension_numbers = #tpu.dot_dimension_numbers<[1], [0], [0], [1], [0, 0, 1, 1], [], []>} : vector<8x128xf32>, vector<128x128xf32>, vector<8x128xf32> -> vector<8x128xf32>
    %18 = vector.broadcast %3 : vector<1x128xf32> to vector<8x128xf32>
    %19 = arith.addf %17, %18 : vector<8x128xf32>
    %cst_21 = arith.constant 0.000000e+00 : f32
    %20 = vector.broadcast %cst_21 : f32 to vector<8x128xf32>
    %21 = arith.maximumf %19, %20 : vector<8x128xf32>
    %cst_22 = arith.constant dense<0.000000e+00> : vector<128xf32>
    %22 = vector.multi_reduction <add>, %21, %cst_22 [0] : vector<8x128xf32> to vector<128xf32>
    %23 = vector.shape_cast %22 : vector<128xf32> to vector<1x128xf32>
    %cst_23 = arith.constant 8.000000e+00 : f32
    %24 = vector.broadcast %cst_23 : f32 to vector<1x128xf32>
    %25 = arith.divf %23, %24 : vector<1x128xf32>
    %26 = vector.broadcast %25 : vector<1x128xf32> to vector<8x128xf32>
    %27 = arith.subf %21, %26 : vector<8x128xf32>
    %28 = arith.mulf %27, %27 : vector<8x128xf32>
    %cst_24 = arith.constant dense<0.000000e+00> : vector<128xf32>
    %29 = vector.multi_reduction <add>, %28, %cst_24 [0] : vector<8x128xf32> to vector<128xf32>
    %30 = vector.shape_cast %29 : vector<128xf32> to vector<1x128xf32>
    %cst_25 = arith.constant 8.000000e+00 : f32
    %31 = vector.broadcast %cst_25 : f32 to vector<1x128xf32>
    %32 = arith.divf %30, %31 : vector<1x128xf32>
    %33 = vector.broadcast %4 : vector<1x128xf32> to vector<8x128xf32>
    %34 = arith.mulf %33, %27 : vector<8x128xf32>
    %cst_26 = arith.constant 9.99999974E-6 : f32
    %35 = vector.broadcast %cst_26 : f32 to vector<1x128xf32>
    %36 = arith.addf %32, %35 : vector<1x128xf32>
    %37 = math.rsqrt %36 : vector<1x128xf32>
    %38 = vector.broadcast %37 : vector<1x128xf32> to vector<8x128xf32>
    %39 = arith.mulf %34, %38 : vector<8x128xf32>
    %40 = vector.broadcast %5 : vector<1x128xf32> to vector<8x128xf32>
    %41 = arith.addf %39, %40 : vector<8x128xf32>
    %c0_27 = arith.constant 0 : index
    %c0_28 = arith.constant 0 : index
    %42 = vector.load %arg4[%c0_27, %c0_28] : memref<128x128xf32, #tpu.memory_space<vmem>>, vector<128x128xf32>
    %cst_29 = arith.constant dense<0.000000e+00> : vector<8x128xf32>
    %43 = tpu.matmul %41, %42, %cst_29 {dimension_numbers = #tpu.dot_dimension_numbers<[1], [0], [0], [1], [0, 0, 1, 1], [], []>} : vector<8x128xf32>, vector<128x128xf32>, vector<8x128xf32> -> vector<8x128xf32>
    %44 = vector.broadcast %6 : vector<1x128xf32> to vector<8x128xf32>
    %45 = arith.addf %43, %44 : vector<8x128xf32>
    %cst_30 = arith.constant 0.000000e+00 : f32
    %46 = vector.broadcast %cst_30 : f32 to vector<8x128xf32>
    %47 = arith.maximumf %45, %46 : vector<8x128xf32>
    %c0_31 = arith.constant 0 : index
    %c0_32 = arith.constant 0 : index
    %48 = vector.load %arg5[%c0_31, %c0_32] : memref<128x128xf32, #tpu.memory_space<vmem>>, vector<128x128xf32>
    %cst_33 = arith.constant dense<0.000000e+00> : vector<8x128xf32>
    %49 = tpu.matmul %47, %48, %cst_33 {dimension_numbers = #tpu.dot_dimension_numbers<[1], [0], [0], [1], [0, 0, 1, 1], [], []>} : vector<8x128xf32>, vector<128x128xf32>, vector<8x128xf32> -> vector<8x128xf32>
    %50 = vector.broadcast %7 : vector<1x128xf32> to vector<8x128xf32>
    %51 = arith.addf %49, %50 : vector<8x128xf32>
    %cst_34 = arith.constant 0.000000e+00 : f32
    %52 = vector.broadcast %cst_34 : f32 to vector<8x128xf32>
    %53 = arith.maximumf %51, %52 : vector<8x128xf32>
    %cst_35 = arith.constant dense<0.000000e+00> : vector<128xf32>
    %54 = vector.multi_reduction <add>, %53, %cst_35 [0] : vector<8x128xf32> to vector<128xf32>
    %55 = vector.shape_cast %54 : vector<128xf32> to vector<1x128xf32>
    %cst_36 = arith.constant 8.000000e+00 : f32
    %56 = vector.broadcast %cst_36 : f32 to vector<1x128xf32>
    %57 = arith.divf %55, %56 : vector<1x128xf32>
    %58 = vector.broadcast %57 : vector<1x128xf32> to vector<8x128xf32>
    %59 = arith.subf %53, %58 : vector<8x128xf32>
    %60 = arith.mulf %59, %59 : vector<8x128xf32>
    %cst_37 = arith.constant dense<0.000000e+00> : vector<128xf32>
    %61 = vector.multi_reduction <add>, %60, %cst_37 [0] : vector<8x128xf32> to vector<128xf32>
    %62 = vector.shape_cast %61 : vector<128xf32> to vector<1x128xf32>
    %cst_38 = arith.constant 8.000000e+00 : f32
    %63 = vector.broadcast %cst_38 : f32 to vector<1x128xf32>
    %64 = arith.divf %62, %63 : vector<1x128xf32>
    %65 = vector.broadcast %8 : vector<1x128xf32> to vector<8x128xf32>
    %66 = arith.mulf %65, %59 : vector<8x128xf32>
    %cst_39 = arith.constant 9.99999974E-6 : f32
    %67 = vector.broadcast %cst_39 : f32 to vector<1x128xf32>
    %68 = arith.addf %64, %67 : vector<1x128xf32>
    %69 = math.rsqrt %68 : vector<1x128xf32>
    %70 = vector.broadcast %69 : vector<1x128xf32> to vector<8x128xf32>
    %71 = arith.mulf %66, %70 : vector<8x128xf32>
    %72 = vector.broadcast %9 : vector<1x128xf32> to vector<8x128xf32>
    %73 = arith.addf %71, %72 : vector<8x128xf32>
    %c0_40 = arith.constant 0 : index
    %c0_41 = arith.constant 0 : index
    %74 = vector.load %arg6[%c0_40, %c0_41] : memref<128x128xf32, #tpu.memory_space<vmem>>, vector<128x128xf32>
    %cst_42 = arith.constant dense<0.000000e+00> : vector<8x128xf32>
    %75 = tpu.matmul %73, %74, %cst_42 {dimension_numbers = #tpu.dot_dimension_numbers<[1], [0], [0], [1], [0, 0, 1, 1], [], []>} : vector<8x128xf32>, vector<128x128xf32>, vector<8x128xf32> -> vector<8x128xf32>
    %76 = vector.broadcast %14 : vector<1x128xf32> to vector<8x128xf32>
    %77 = arith.addf %75, %76 : vector<8x128xf32>
    %c0_43 = arith.constant 0 : index
    %c0_44 = arith.constant 0 : index
    %78 = vector.load %arg7[%c0_43, %c0_44] : memref<128x256xf32, #tpu.memory_space<vmem>>, vector<128x256xf32>
    %cst_45 = arith.constant dense<0.000000e+00> : vector<8x256xf32>
    %79 = tpu.matmul %47, %78, %cst_45 {dimension_numbers = #tpu.dot_dimension_numbers<[1], [0], [0], [1], [0, 0, 1, 1], [], []>} : vector<8x128xf32>, vector<128x256xf32>, vector<8x256xf32> -> vector<8x256xf32>
    %80 = vector.broadcast %13 : vector<1x256xf32> to vector<8x256xf32>
    %81 = arith.addf %79, %80 : vector<8x256xf32>
    %82 = vector.extract_strided_slice %81 {offsets = [0, 0], sizes = [8, 128], strides = [1, 1]} : vector<8x256xf32> to vector<8x128xf32>
    %83 = vector.extract_strided_slice %81 {offsets = [0, 128], sizes = [8, 128], strides = [1, 1]} : vector<8x256xf32> to vector<8x128xf32>
    %cst_46 = arith.constant 5.000000e-01 : f32
    %84 = vector.broadcast %cst_46 : f32 to vector<8x128xf32>
    %85 = arith.mulf %84, %83 : vector<8x128xf32>
    %86 = math.exp %85 : vector<8x128xf32>
    %87 = arith.mulf %2, %86 : vector<8x128xf32>
    %88 = arith.addf %82, %87 : vector<8x128xf32>
    %c0_47 = arith.constant 0 : index
    %c0_48 = arith.constant 0 : index
    %89 = vector.load %arg8[%c0_47, %c0_48] : memref<256x128xf32, #tpu.memory_space<vmem>>, vector<128x128xf32>
    %cst_49 = arith.constant dense<0.000000e+00> : vector<8x128xf32>
    %90 = tpu.matmul %88, %89, %cst_49 {dimension_numbers = #tpu.dot_dimension_numbers<[1], [0], [0], [1], [0, 0, 1, 1], [], []>} : vector<8x128xf32>, vector<128x128xf32>, vector<8x128xf32> -> vector<8x128xf32>
    %c128 = arith.constant 128 : index
    %c0_50 = arith.constant 0 : index
    %91 = vector.load %arg8[%c128, %c0_50] : memref<256x128xf32, #tpu.memory_space<vmem>>, vector<128x128xf32>
    %cst_51 = arith.constant dense<0.000000e+00> : vector<8x128xf32>
    %92 = tpu.matmul %1, %91, %cst_51 {dimension_numbers = #tpu.dot_dimension_numbers<[1], [0], [0], [1], [0, 0, 1, 1], [], []>} : vector<8x128xf32>, vector<128x128xf32>, vector<8x128xf32> -> vector<8x128xf32>
    %93 = arith.addf %90, %92 : vector<8x128xf32>
    %94 = vector.broadcast %10 : vector<1x128xf32> to vector<8x128xf32>
    %95 = arith.addf %93, %94 : vector<8x128xf32>
    %cst_52 = arith.constant 0.000000e+00 : f32
    %96 = vector.broadcast %cst_52 : f32 to vector<8x128xf32>
    %97 = arith.maximumf %95, %96 : vector<8x128xf32>
    %cst_53 = arith.constant dense<0.000000e+00> : vector<128xf32>
    %98 = vector.multi_reduction <add>, %97, %cst_53 [0] : vector<8x128xf32> to vector<128xf32>
    %99 = vector.shape_cast %98 : vector<128xf32> to vector<1x128xf32>
    %cst_54 = arith.constant 8.000000e+00 : f32
    %100 = vector.broadcast %cst_54 : f32 to vector<1x128xf32>
    %101 = arith.divf %99, %100 : vector<1x128xf32>
    %102 = vector.broadcast %101 : vector<1x128xf32> to vector<8x128xf32>
    %103 = arith.subf %97, %102 : vector<8x128xf32>
    %104 = arith.mulf %103, %103 : vector<8x128xf32>
    %cst_55 = arith.constant dense<0.000000e+00> : vector<128xf32>
    %105 = vector.multi_reduction <add>, %104, %cst_55 [0] : vector<8x128xf32> to vector<128xf32>
    %106 = vector.shape_cast %105 : vector<128xf32> to vector<1x128xf32>
    %cst_56 = arith.constant 8.000000e+00 : f32
    %107 = vector.broadcast %cst_56 : f32 to vector<1x128xf32>
    %108 = arith.divf %106, %107 : vector<1x128xf32>
    %109 = vector.broadcast %11 : vector<1x128xf32> to vector<8x128xf32>
    %110 = arith.mulf %109, %103 : vector<8x128xf32>
    %cst_57 = arith.constant 9.99999974E-6 : f32
    %111 = vector.broadcast %cst_57 : f32 to vector<1x128xf32>
    %112 = arith.addf %108, %111 : vector<1x128xf32>
    %113 = math.rsqrt %112 : vector<1x128xf32>
    %114 = vector.broadcast %113 : vector<1x128xf32> to vector<8x128xf32>
    %115 = arith.mulf %110, %114 : vector<8x128xf32>
    %116 = vector.broadcast %12 : vector<1x128xf32> to vector<8x128xf32>
    %117 = arith.addf %115, %116 : vector<8x128xf32>
    %c0_58 = arith.constant 0 : index
    %c0_59 = arith.constant 0 : index
    %118 = vector.load %arg9[%c0_58, %c0_59] : memref<128x128xf32, #tpu.memory_space<vmem>>, vector<128x128xf32>
    %cst_60 = arith.constant dense<0.000000e+00> : vector<8x128xf32>
    %119 = tpu.matmul %117, %118, %cst_60 {dimension_numbers = #tpu.dot_dimension_numbers<[1], [0], [0], [1], [0, 0, 1, 1], [], []>} : vector<8x128xf32>, vector<128x128xf32>, vector<8x128xf32> -> vector<8x128xf32>
    %120 = vector.broadcast %15 : vector<1x128xf32> to vector<8x128xf32>
    %121 = arith.addf %119, %120 : vector<8x128xf32>
    %c0_61 = arith.constant 0 : index
    %c0_62 = arith.constant 0 : index
    %122 = vector.load %arg11[%c0_61, %c0_62] : memref<8x512xf32, #tpu.memory_space<vmem>>, vector<8x128xf32>
    tpu.vector_store %arg11[%c0_61, %c0_62], %121 {strides = array<i32>} : memref<8x512xf32, #tpu.memory_space<vmem>>, vector<8x128xf32>,
    %c0_63 = arith.constant 0 : index
    %c128_64 = arith.constant 128 : index
    %123 = vector.load %arg11[%c0_63, %c128_64] : memref<8x512xf32, #tpu.memory_space<vmem>>, vector<8x256xf32>
    tpu.vector_store %arg11[%c0_63, %c128_64], %81 {strides = array<i32>} : memref<8x512xf32, #tpu.memory_space<vmem>>, vector<8x256xf32>,
    %c0_65 = arith.constant 0 : index
    %c384 = arith.constant 384 : index
    %124 = vector.load %arg11[%c0_65, %c384] : memref<8x512xf32, #tpu.memory_space<vmem>>, vector<8x128xf32>
    tpu.vector_store %arg11[%c0_65, %c384], %77 {strides = array<i32>} : memref<8x512xf32, #tpu.memory_space<vmem>>, vector<8x128xf32>,
    return
  }
}

</mosaic_0001>

<llo_original>
// kernel: cvae_forward.1
$region0: #{cvae_forward.1}
  #allocation0 [shape = 'u32[]', space=smem, size = 0x4, offset = 0x4, fixed_abs, tag = 'smem constant byte address 0x4 - core index']
  #allocation1 [shape = 'u32[72,128]{1,0:T(1,128)}', space=vmem, size = 0x9000, scoped, tag = 'internal scratch']
  %s0 = inlined_call_operand.vmem [shape: f32[8,128], index: 0, kind: input, shape index: {}]
  %s1 = inlined_call_operand.vmem [shape: f32[8,128], index: 1, kind: input, shape index: {}]
  %s2 = inlined_call_operand.vmem [shape: f32[8,128], index: 2, kind: input, shape index: {}]
  %s3 = inlined_call_operand.hbm [shape: f32[128,128], index: 3, kind: input, shape index: {}]
  %s4 = inlined_call_operand.hbm [shape: f32[128,128], index: 4, kind: input, shape index: {}]
  %s5 = inlined_call_operand.hbm [shape: f32[128,128], index: 5, kind: input, shape index: {}]
  %s6 = inlined_call_operand.hbm [shape: f32[128,128], index: 6, kind: input, shape index: {}]
  %s7 = inlined_call_operand.hbm [shape: f32[128,256], index: 7, kind: input, shape index: {}]
  %s8 = inlined_call_operand.hbm [shape: f32[256,128], index: 8, kind: input, shape index: {}]
  %s9 = inlined_call_operand.hbm [shape: f32[128,128], index: 9, kind: input, shape index: {}]
  %s10 = inlined_call_operand.vmem [shape: f32[16,256], index: 10, kind: input, shape index: {}]
  %s11 = inlined_call_operand.vmem [shape: f32[8,512], index: 11, kind: output, shape index: {}]
  %s12 = sld [smem:[#allocation0]]
  $region82: #{cvae_forward.1} parent=0
    _
  %s14 = ssub.s32 1, %s12
  %s15 = scalar_select 0, %s14, %s12
  $region1: #{cvae_forward.1} parent=0
    #allocation2 [shape = 'u8[65536]{0}', space=vmem, size = 0x10000, scoped, tag = 'input window, operand 3, single buffered']
    #allocation3 [shape = 's32[1]{0}', space=sflag, size = 0x4, scoped, tag = 'scoped memory for cvae_forward.1']
    #allocation4 [shape = 'u8[65536]{0}', space=vmem, size = 0x10000, scoped, tag = 'input window, operand 4, single buffered']
    #allocation5 [shape = 's32[1]{0}', space=sflag, size = 0x4, scoped, tag = 'scoped memory for cvae_forward.1']
    #allocation6 [shape = 'u8[65536]{0}', space=vmem, size = 0x10000, scoped, tag = 'input window, operand 5, single buffered']
    #allocation7 [shape = 'u8[65536]{0}', space=vmem, size = 0x10000, scoped, tag = 'input window, operand 6, single buffered']
    #allocation8 [shape = 's32[1]{0}', space=sflag, size = 0x4, scoped, tag = 'scoped memory for cvae_forward.1']
    #allocation9 [shape = 'u8[131072]{0}', space=vmem, size = 0x20000, scoped, tag = 'input window, operand 7, single buffered']
    #allocation10 [shape = 'u8[131072]{0}', space=vmem, size = 0x20000, scoped, tag = 'input window, operand 8, single buffered']
    #allocation11 [shape = 's32[1]{0}', space=sflag, size = 0x4, scoped, tag = 'scoped memory for cvae_forward.1']
    #allocation12 [shape = 'u8[65536]{0}', space=vmem, size = 0x10000, scoped, tag = 'input window, operand 9, single buffered']
    %16 = vsyncpa [#allocation3], 0
    %17 = vsyncpa [#allocation5], 0
    %18 = vsyncpa [#allocation8], 0
    %19 = vsyncpa [#allocation11], 0
    // Predicated region
    $region2: #{cvae_forward.1} parent=1 // pred_check
      _
    $region3: #{cvae_forward.1} parent=1 // pred_check_branch
      %21 = sbr.rel (0) target = $region5
    $region4: #{cvae_forward.1} parent=1 // pred_region
      _
    $region5: #{cvae_forward.1} parent=1 // pred_fallthru
      _
    // Predicated region
    $region6: #{cvae_forward.1} parent=1 // pred_check
      _
    $region7: #{cvae_forward.1} parent=1 // pred_check_branch
      %23 = sbr.rel (0) target = $region9
    $region8: #{cvae_forward.1} parent=1 // pred_region
      _
    $region9: #{cvae_forward.1} parent=1 // pred_fallthru
      _
    // Predicated region
    $region10: #{cvae_forward.1} parent=1 // pred_check
      _
    $region11: #{cvae_forward.1} parent=1 // pred_check_branch
      %25 = sbr.rel (0) target = $region13
    $region12: #{cvae_forward.1} parent=1 // pred_region
      _
    $region13: #{cvae_forward.1} parent=1 // pred_fallthru
      _
    // Predicated region
    $region14: #{cvae_forward.1} parent=1 // pred_check
      _
    $region15: #{cvae_forward.1} parent=1 // pred_check_branch
      %27 = sbr.rel (0) target = $region17
    $region16: #{cvae_forward.1} parent=1 // pred_region
      %29 = vsyncadd [#allocation3], 0
      %s30 = sshll.u32 %s3, 4
      %s31 = int_to_ptr.hbm [resolvable:$true] %s30
      %s32 = sshll.u32 [#allocation2], 4
      %s33 = int_to_ptr.vmem [resolvable:$true] %s32
      %38 = dma.hbm_to_vmem [thread:$0]  %s31, 2048, %s33, [#allocation3], 128, 128, 8
    $region17: #{cvae_forward.1} parent=1 // pred_fallthru
      _
    // Predicated region
    $region18: #{cvae_forward.1} parent=1 // pred_check
      _
    $region19: #{cvae_forward.1} parent=1 // pred_check_branch
      %40 = sbr.rel (0) target = $region21
    $region20: #{cvae_forward.1} parent=1 // pred_region
      %42 = vsyncadd [#allocation5], 0
      %s43 = sshll.u32 %s4, 4
      %s44 = int_to_ptr.hbm [resolvable:$true] %s43
      %s45 = sshll.u32 [#allocation4], 4
      %s46 = int_to_ptr.vmem [resolvable:$true] %s45
      %51 = dma.hbm_to_vmem [thread:$0]  %s44, 2048, %s46, [#allocation5], 128, 128, 8
    $region21: #{cvae_forward.1} parent=1 // pred_fallthru
      _
    // Predicated region
    $region22: #{cvae_forward.1} parent=1 // pred_check
      _
    $region23: #{cvae_forward.1} parent=1 // pred_check_branch
      %53 = sbr.rel (0) target = $region25
    $region24: #{cvae_forward.1} parent=1 // pred_region
      %55 = vsyncadd [#allocation5], 0
      %s56 = sshll.u32 %s5, 4
      %s57 = int_to_ptr.hbm [resolvable:$true] %s56
      %s58 = sshll.u32 [#allocation6], 4
      %s59 = int_to_ptr.vmem [resolvable:$true] %s58
      %64 = dma.hbm_to_vmem [thread:$0]  %s57, 2048, %s59, [#allocation5], 128, 128, 8
    $region25: #{cvae_forward.1} parent=1 // pred_fallthru
      _
    // Predicated region
    $region26: #{cvae_forward.1} parent=1 // pred_check
      _
    $region27: #{cvae_forward.1} parent=1 // pred_check_branch
      %66 = sbr.rel (0) target = $region29
    $region28: #{cvae_forward.1} parent=1 // pred_region
      %68 = vsyncadd [#allocation8], 0
      %s69 = sshll.u32 %s6, 4
      %s70 = int_to_ptr.hbm [resolvable:$true] %s69
      %s71 = sshll.u32 [#allocation7], 4
      %s72 = int_to_ptr.vmem [resolvable:$true] %s71
      %77 = dma.hbm_to_vmem [thread:$0]  %s70, 2048, %s72, [#allocation8], 128, 128, 8
    $region29: #{cvae_forward.1} parent=1 // pred_fallthru
      _
    // Predicated region
    $region30: #{cvae_forward.1} parent=1 // pred_check
      _
    $region31: #{cvae_forward.1} parent=1 // pred_check_branch
      %79 = sbr.rel (0) target = $region33
    $region32: #{cvae_forward.1} parent=1 // pred_region
      %81 = vsyncadd [#allocation8], 0
      %s82 = sshll.u32 %s7, 4
      %s83 = int_to_ptr.hbm [resolvable:$true] %s82
      %s84 = sshll.u32 [#allocation9], 4
      %s85 = int_to_ptr.vmem [resolvable:$true] %s84
      %90 = dma.hbm_to_vmem [thread:$0]  %s83, 4096, %s85, [#allocation8], 256, 256, 16
    $region33: #{cvae_forward.1} parent=1 // pred_fallthru
      _
    // Predicated region
    $region34: #{cvae_forward.1} parent=1 // pred_check
      _
    $region35: #{cvae_forward.1} parent=1 // pred_check_branch
      %92 = sbr.rel (0) target = $region37
    $region36: #{cvae_forward.1} parent=1 // pred_region
      %94 = vsyncadd [#allocation11], 0
      %s95 = sshll.u32 %s8, 4
      %s96 = int_to_ptr.hbm [resolvable:$true] %s95
      %s97 = sshll.u32 [#allocation10], 4
      %s98 = int_to_ptr.vmem [resolvable:$true] %s97
      %103 = dma.hbm_to_vmem [thread:$0]  %s96, 4096, %s98, [#allocation11], 128, 128, 8
    $region37: #{cvae_forward.1} parent=1 // pred_fallthru
      _
    // Predicated region
    $region38: #{cvae_forward.1} parent=1 // pred_check
      _
    $region39: #{cvae_forward.1} parent=1 // pred_check_branch
      %105 = sbr.rel (0) target = $region41
    $region40: #{cvae_forward.1} parent=1 // pred_region
      %107 = vsyncadd [#allocation11], 0
      %s108 = sshll.u32 %s9, 4
      %s109 = int_to_ptr.hbm [resolvable:$true] %s108
      %s110 = sshll.u32 [#allocation12], 4
      %s111 = int_to_ptr.vmem [resolvable:$true] %s110
      %116 = dma.hbm_to_vmem [thread:$0]  %s109, 2048, %s111, [#allocation11], 128, 128, 8
    $region41: #{cvae_forward.1} parent=1 // pred_fallthru
      _
    // Predicated region
    $region42: #{cvae_forward.1} parent=1 // pred_check
      _
    $region43: #{cvae_forward.1} parent=1 // pred_check_branch
      %118 = sbr.rel (0) target = $region45
    $region44: #{cvae_forward.1} parent=1 // pred_region
      _
    $region45: #{cvae_forward.1} parent=1 // pred_fallthru
      _
    // Predicated region
    $region46: #{cvae_forward.1} parent=1 // pred_check
      _
    $region47: #{cvae_forward.1} parent=1 // pred_check_branch
      %120 = sbr.rel (0) target = $region49
    $region48: #{cvae_forward.1} parent=1 // pred_region
      %122 = dma.done [#allocation3], 2048
    $region49: #{cvae_forward.1} parent=1 // pred_fallthru
      _
    // Predicated region
    $region50: #{cvae_forward.1} parent=1 // pred_check
      _
    $region51: #{cvae_forward.1} parent=1 // pred_check_branch
      %124 = sbr.rel (0) target = $region53
    $region52: #{cvae_forward.1} parent=1 // pred_region
      %126 = dma.done [#allocation5], 2048
    $region53: #{cvae_forward.1} parent=1 // pred_fallthru
      _
    // Predicated region
    $region54: #{cvae_forward.1} parent=1 // pred_check
      _
    $region55: #{cvae_forward.1} parent=1 // pred_check_branch
      %128 = sbr.rel (0) target = $region57
    $region56: #{cvae_forward.1} parent=1 // pred_region
      %130 = dma.done [#allocation5], 2048
    $region57: #{cvae_forward.1} parent=1 // pred_fallthru
      _
    // Predicated region
    $region58: #{cvae_forward.1} parent=1 // pred_check
      _
    $region59: #{cvae_forward.1} parent=1 // pred_check_branch
      %132 = sbr.rel (0) target = $region61
    $region60: #{cvae_forward.1} parent=1 // pred_region
      %134 = dma.done [#allocation8], 2048
    $region61: #{cvae_forward.1} parent=1 // pred_fallthru
      _
    // Predicated region
    $region62: #{cvae_forward.1} parent=1 // pred_check
      _
    $region63: #{cvae_forward.1} parent=1 // pred_check_branch
      %136 = sbr.rel (0) target = $region65
    $region64: #{cvae_forward.1} parent=1 // pred_region
      %138 = dma.done [#allocation8], 4096
    $region65: #{cvae_forward.1} parent=1 // pred_fallthru
      _
    // Predicated region
    $region66: #{cvae_forward.1} parent=1 // pred_check
      _
    $region67: #{cvae_forward.1} parent=1 // pred_check_branch
      %140 = sbr.rel (0) target = $region69
    $region68: #{cvae_forward.1} parent=1 // pred_region
      %142 = dma.done [#allocation11], 4096
    $region69: #{cvae_forward.1} parent=1 // pred_fallthru
      _
    // Predicated region
    $region70: #{cvae_forward.1} parent=1 // pred_check
      _
    $region71: #{cvae_forward.1} parent=1 // pred_check_branch
      %144 = sbr.rel (0) target = $region73
    $region72: #{cvae_forward.1} parent=1 // pred_region
      %146 = dma.done [#allocation11], 2048
    $region73: #{cvae_forward.1} parent=1 // pred_fallthru
      _
    %v147 = vld [vmem:[%s0] sm:$0xff]
    %v148 = vld [vmem:[%s1] sm:$0xff]
    %v149 = vld [vmem:[%s2] sm:$0xff]
    %v150 = vld [vmem:[%s10] ss:$0 sm:$0xff]
    %v151 = vld [vmem:[%s10 + $0x1] ss:$0 sm:$0xff]
    %v152 = vld [vmem:[%s10 + $0x2] ss:$0 sm:$0xff]
    %v153 = vld [vmem:[%s10 + $0x3] ss:$0 sm:$0xff]
    %v154 = vld [vmem:[%s10 + $0x4] ss:$0 sm:$0xff]
    %v155 = vld [vmem:[%s10 + $0x5] ss:$0 sm:$0xff]
    %v156 = vld [vmem:[%s10 + $0x6] ss:$0 sm:$0xff]
    %v157 = vld [vmem:[%s10 + $0x7] ss:$0 sm:$0xff]
    %v158 = vld [vmem:[%s10 + $0x10] ss:$0 sm:$0xff]
    %v159 = vld [vmem:[%s10 + $0x11] ss:$0 sm:$0xff]
    %s160 = scalar_lea.vmem %s10, 18
    %v161 = vld [vmem:[%s160] ss:$8 sm:$0x3]
    %v162 = vld [vmem:[%s10 + $0x13] ss:$0 sm:$0xff]
    %v163 = vld [vmem:[%s10 + $0x14] ss:$0 sm:$0xff]
    %v164 = vld [vmem:[#allocation2] sm:$0xff]
    %v165 = vld [vmem:[#allocation2 + $0x8] sm:$0xff]
    %v166 = vld [vmem:[#allocation2 + $0x10] sm:$0xff]
    %v167 = vld [vmem:[#allocation2 + $0x18] sm:$0xff]
    %v168 = vld [vmem:[#allocation2 + $0x20] sm:$0xff]
    %v169 = vld [vmem:[#allocation2 + $0x28] sm:$0xff]
    %v170 = vld [vmem:[#allocation2 + $0x30] sm:$0xff]
    %v171 = vld [vmem:[#allocation2 + $0x38] sm:$0xff]
    %v172 = vld [vmem:[#allocation2 + $0x40] sm:$0xff]
    %v173 = vld [vmem:[#allocation2 + $0x48] sm:$0xff]
    %v174 = vld [vmem:[#allocation2 + $0x50] sm:$0xff]
    %v175 = vld [vmem:[#allocation2 + $0x58] sm:$0xff]
    %v176 = vld [vmem:[#allocation2 + $0x60] sm:$0xff]
    %v177 = vld [vmem:[#allocation2 + $0x68] sm:$0xff]
    %v178 = vld [vmem:[#allocation2 + $0x70] sm:$0xff]
    %v179 = vld [vmem:[#allocation2 + $0x78] sm:$0xff]
    %180 = vmatpush.msra.mxu0 %v179
    %181 = vmatpush.msra.mxu0 %v178
    %182 = vmatpush.msra.mxu0 %v177
    %183 = vmatpush.msra.mxu0 %v176
    %184 = vmatpush.msra.mxu0 %v175
    %185 = vmatpush.msra.mxu0 %v174
    %186 = vmatpush.msra.mxu0 %v173
    %187 = vmatpush.msra.mxu0 %v172
    %188 = vmatpush.msra.mxu0 %v171
    %189 = vmatpush.msra.mxu0 %v170
    %190 = vmatpush.msra.mxu0 %v169
    %191 = vmatpush.msra.mxu0 %v168
    %192 = vmatpush.msra.mxu0 %v167
    %193 = vmatpush.msra.mxu0 %v166
    %194 = vmatpush.msra.mxu0 %v165
    %195 = vmatpush.msra.mxu0 %v164
    %196 = vmatmul.f32.gmra.mxu0 %v147
    %v197 = vpop.f32.mrf.mxu0
    %v198 = vadd.f32 %v150, %v197
    %199 = vdwg.mxu0
    %v200 = vmax.f32 %v198, 0.0
    %v201 = vrot.slane %v200, 4
    %v202 = vadd.f32 %v200, %v201
    %v203 = vrot.slane %v202, 2
    %v204 = vadd.f32 %v202, %v203
    %v205 = vrot.slane %v204, 1
    %v206 = vadd.f32 %v204, %v205
    %v207 = vrcp.pop 8.0
    %v208 = vmul.f32 8.0, %v207
    %v209 = vsub.f32 1.0, %v208
    %v210 = vmul.f32 %v207, %v209
    %v211 = vadd.f32 %v207, %v210
    %vm212 = vweird.f32 %v207
    %v213 = vsel %vm212, %v207, %v211
    %v214 = vmul.f32 %v206, %v213
    %v215 = vsub.f32 %v200, %v214
    %v216 = vmul.f32 %v215, %v215
    %v217 = vrot.slane %v216, 4
    %v218 = vadd.f32 %v216, %v217
    %v219 = vrot.slane %v218, 2
    %v220 = vadd.f32 %v218, %v219
    %v221 = vrot.slane %v220, 1
    %v222 = vadd.f32 %v220, %v221
    %v223 = vmul.f32 %v222, %v213
    %v224 = vmul.f32 %v151, %v215
    %v225 = vadd.f32 %v223, 1e-05
    %v226 = vrsqrt.pop %v225
    %v227 = vmul.f32 %v226, %v225
    %v228 = vmul.f32 %v227, %v226
    %v229 = vmul.f32 0.5, %v228
    %v230 = vsub.f32 1.5, %v229
    %v231 = vmul.f32 %v226, %v230
    %vm232 = vweird.f32 %v225
    %vm233 = vweird.f32 %v226
    %vm234 = vmor %vm232, %vm233
    %v235 = vsel %vm234, %v226, %v231
    %v236 = vmul.f32 %v224, %v235
    %v237 = vadd.f32 %v236, %v152
    %v238 = vld [vmem:[#allocation4] sm:$0xff]
    %v239 = vld [vmem:[#allocation4 + $0x8] sm:$0xff]
    %v240 = vld [vmem:[#allocation4 + $0x10] sm:$0xff]
    %v241 = vld [vmem:[#allocation4 + $0x18] sm:$0xff]
    %v242 = vld [vmem:[#allocation4 + $0x20] sm:$0xff]
    %v243 = vld [vmem:[#allocation4 + $0x28] sm:$0xff]
    %v244 = vld [vmem:[#allocation4 + $0x30] sm:$0xff]
    %v245 = vld [vmem:[#allocation4 + $0x38] sm:$0xff]
    %v246 = vld [vmem:[#allocation4 + $0x40] sm:$0xff]
    %v247 = vld [vmem:[#allocation4 + $0x48] sm:$0xff]
    %v248 = vld [vmem:[#allocation4 + $0x50] sm:$0xff]
    %v249 = vld [vmem:[#allocation4 + $0x58] sm:$0xff]
    %v250 = vld [vmem:[#allocation4 + $0x60] sm:$0xff]
    %v251 = vld [vmem:[#allocation4 + $0x68] sm:$0xff]
    %v252 = vld [vmem:[#allocation4 + $0x70] sm:$0xff]
    %v253 = vld [vmem:[#allocation4 + $0x78] sm:$0xff]
    %254 = vmatpush.msra.mxu0 %v253
    %255 = vmatpush.msra.mxu0 %v252
    %256 = vmatpush.msra.mxu0 %v251
    %257 = vmatpush.msra.mxu0 %v250
    %258 = vmatpush.msra.mxu0 %v249
    %259 = vmatpush.msra.mxu0 %v248
    %260 = vmatpush.msra.mxu0 %v247
    %261 = vmatpush.msra.mxu0 %v246
    %262 = vmatpush.msra.mxu0 %v245
    %263 = vmatpush.msra.mxu0 %v244
    %264 = vmatpush.msra.mxu0 %v243
    %265 = vmatpush.msra.mxu0 %v242
    %266 = vmatpush.msra.mxu0 %v241
    %267 = vmatpush.msra.mxu0 %v240
    %268 = vmatpush.msra.mxu0 %v239
    %269 = vmatpush.msra.mxu0 %v238
    %270 = vmatmul.f32.gmra.mxu0 %v237
    %v271 = vpop.f32.mrf.mxu0
    %v272 = vadd.f32 %v153, %v271
    %273 = vdwg.mxu0
    %v274 = vmax.f32 %v272, 0.0
    %v275 = vld [vmem:[#allocation6] sm:$0xff]
    %v276 = vld [vmem:[#allocation6 + $0x8] sm:$0xff]
    %v277 = vld [vmem:[#allocation6 + $0x10] sm:$0xff]
    %v278 = vld [vmem:[#allocation6 + $0x18] sm:$0xff]
    %v279 = vld [vmem:[#allocation6 + $0x20] sm:$0xff]
    %v280 = vld [vmem:[#allocation6 + $0x28] sm:$0xff]
    %v281 = vld [vmem:[#allocation6 + $0x30] sm:$0xff]
    %v282 = vld [vmem:[#allocation6 + $0x38] sm:$0xff]
    %v283 = vld [vmem:[#allocation6 + $0x40] sm:$0xff]
    %v284 = vld [vmem:[#allocation6 + $0x48] sm:$0xff]
    %v285 = vld [vmem:[#allocation6 + $0x50] sm:$0xff]
    %v286 = vld [vmem:[#allocation6 + $0x58] sm:$0xff]
    %v287 = vld [vmem:[#allocation6 + $0x60] sm:$0xff]
    %v288 = vld [vmem:[#allocation6 + $0x68] sm:$0xff]
    %v289 = vld [vmem:[#allocation6 + $0x70] sm:$0xff]
    %v290 = vld [vmem:[#allocation6 + $0x78] sm:$0xff]
    %291 = vmatpush.msra.mxu0 %v290
    %292 = vmatpush.msra.mxu0 %v289
    %293 = vmatpush.msra.mxu0 %v288
    %294 = vmatpush.msra.mxu0 %v287
    %295 = vmatpush.msra.mxu0 %v286
    %296 = vmatpush.msra.mxu0 %v285
    %297 = vmatpush.msra.mxu0 %v284
    %298 = vmatpush.msra.mxu0 %v283
    %299 = vmatpush.msra.mxu0 %v282
    %300 = vmatpush.msra.mxu0 %v281
    %301 = vmatpush.msra.mxu0 %v280
    %302 = vmatpush.msra.mxu0 %v279
    %303 = vmatpush.msra.mxu0 %v278
    %304 = vmatpush.msra.mxu0 %v277
    %305 = vmatpush.msra.mxu0 %v276
    %306 = vmatpush.msra.mxu0 %v275
    %307 = vmatmul.f32.gmra.mxu0 %v274
    %v308 = vpop.f32.mrf.mxu0
    %v309 = vadd.f32 %v154, %v308
    %310 = vdwg.mxu0
    %v311 = vmax.f32 %v309, 0.0
    %v312 = vrot.slane %v311, 4
    %v313 = vadd.f32 %v311, %v312
    %v314 = vrot.slane %v313, 2
    %v315 = vadd.f32 %v313, %v314
    %v316 = vrot.slane %v315, 1
    %v317 = vadd.f32 %v315, %v316
    %v318 = vmul.f32 %v317, %v213
    %v319 = vsub.f32 %v311, %v318
    %v320 = vmul.f32 %v319, %v319
    %v321 = vrot.slane %v320, 4
    %v322 = vadd.f32 %v320, %v321
    %v323 = vrot.slane %v322, 2
    %v324 = vadd.f32 %v322, %v323
    %v325 = vrot.slane %v324, 1
    %v326 = vadd.f32 %v324, %v325
    %v327 = vmul.f32 %v326, %v213
    %v328 = vmul.f32 %v155, %v319
    %v329 = vadd.f32 %v327, 1e-05
    %v330 = vrsqrt.pop %v329
    %v331 = vmul.f32 %v330, %v329
    %v332 = vmul.f32 %v331, %v330
    %v333 = vmul.f32 0.5, %v332
    %v334 = vsub.f32 1.5, %v333
    %v335 = vmul.f32 %v330, %v334
    %vm336 = vweird.f32 %v329
    %vm337 = vweird.f32 %v330
    %vm338 = vmor %vm336, %vm337
    %v339 = vsel %vm338, %v330, %v335
    %v340 = vmul.f32 %v328, %v339
    %v341 = vadd.f32 %v340, %v156
    %v342 = vld [vmem:[#allocation7] sm:$0xff]
    %v343 = vld [vmem:[#allocation7 + $0x8] sm:$0xff]
    %v344 = vld [vmem:[#allocation7 + $0x10] sm:$0xff]
    %v345 = vld [vmem:[#allocation7 + $0x18] sm:$0xff]
    %v346 = vld [vmem:[#allocation7 + $0x20] sm:$0xff]
    %v347 = vld [vmem:[#allocation7 + $0x28] sm:$0xff]
    %v348 = vld [vmem:[#allocation7 + $0x30] sm:$0xff]
    %v349 = vld [vmem:[#allocation7 + $0x38] sm:$0xff]
    %v350 = vld [vmem:[#allocation7 + $0x40] sm:$0xff]
    %v351 = vld [vmem:[#allocation7 + $0x48] sm:$0xff]
    %v352 = vld [vmem:[#allocation7 + $0x50] sm:$0xff]
    %v353 = vld [vmem:[#allocation7 + $0x58] sm:$0xff]
    %v354 = vld [vmem:[#allocation7 + $0x60] sm:$0xff]
    %v355 = vld [vmem:[#allocation7 + $0x68] sm:$0xff]
    %v356 = vld [vmem:[#allocation7 + $0x70] sm:$0xff]
    %v357 = vld [vmem:[#allocation7 + $0x78] sm:$0xff]
    %358 = vmatpush.msra.mxu0 %v357
    %359 = vmatpush.msra.mxu0 %v356
    %360 = vmatpush.msra.mxu0 %v355
    %361 = vmatpush.msra.mxu0 %v354
    %362 = vmatpush.msra.mxu0 %v353
    %363 = vmatpush.msra.mxu0 %v352
    %364 = vmatpush.msra.mxu0 %v351
    %365 = vmatpush.msra.mxu0 %v350
    %366 = vmatpush.msra.mxu0 %v349
    %367 = vmatpush.msra.mxu0 %v348
    %368 = vmatpush.msra.mxu0 %v347
    %369 = vmatpush.msra.mxu0 %v346
    %370 = vmatpush.msra.mxu0 %v345
    %371 = vmatpush.msra.mxu0 %v344
    %372 = vmatpush.msra.mxu0 %v343
    %373 = vmatpush.msra.mxu0 %v342
    %374 = vmatmul.f32.gmra.mxu0 %v341
    %v375 = vpop.f32.mrf.mxu0
    %v376 = vadd.f32 %v162, %v375
    %377 = vdwg.mxu0
    %v378 = vld [vmem:[#allocation9] sm:$0xff]
    %v379 = vld [vmem:[#allocation9 + $0x8] sm:$0xff]
    %v380 = vld [vmem:[#allocation9 + $0x10] sm:$0xff]
    %v381 = vld [vmem:[#allocation9 + $0x18] sm:$0xff]
    %v382 = vld [vmem:[#allocation9 + $0x20] sm:$0xff]
    %v383 = vld [vmem:[#allocation9 + $0x28] sm:$0xff]
    %v384 = vld [vmem:[#allocation9 + $0x30] sm:$0xff]
    %v385 = vld [vmem:[#allocation9 + $0x38] sm:$0xff]
    %v386 = vld [vmem:[#allocation9 + $0x40] sm:$0xff]
    %v387 = vld [vmem:[#allocation9 + $0x48] sm:$0xff]
    %v388 = vld [vmem:[#allocation9 + $0x50] sm:$0xff]
    %v389 = vld [vmem:[#allocation9 + $0x58] sm:$0xff]
    %v390 = vld [vmem:[#allocation9 + $0x60] sm:$0xff]
    %v391 = vld [vmem:[#allocation9 + $0x68] sm:$0xff]
    %v392 = vld [vmem:[#allocation9 + $0x70] sm:$0xff]
    %v393 = vld [vmem:[#allocation9 + $0x78] sm:$0xff]
    %v394 = vld [vmem:[#allocation9 + $0x80] sm:$0xff]
    %v395 = vld [vmem:[#allocation9 + $0x88] sm:$0xff]
    %v396 = vld [vmem:[#allocation9 + $0x90] sm:$0xff]
    %v397 = vld [vmem:[#allocation9 + $0x98] sm:$0xff]
    %v398 = vld [vmem:[#allocation9 + $0xa0] sm:$0xff]
    %v399 = vld [vmem:[#allocation9 + $0xa8] sm:$0xff]
    %v400 = vld [vmem:[#allocation9 + $0xb0] sm:$0xff]
    %v401 = vld [vmem:[#allocation9 + $0xb8] sm:$0xff]
    %v402 = vld [vmem:[#allocation9 + $0xc0] sm:$0xff]
    %v403 = vld [vmem:[#allocation9 + $0xc8] sm:$0xff]
    %v404 = vld [vmem:[#allocation9 + $0xd0] sm:$0xff]
    %v405 = vld [vmem:[#allocation9 + $0xd8] sm:$0xff]
    %v406 = vld [vmem:[#allocation9 + $0xe0] sm:$0xff]
    %v407 = vld [vmem:[#allocation9 + $0xe8] sm:$0xff]
    %v408 = vld [vmem:[#allocation9 + $0xf0] sm:$0xff]
    %v409 = vld [vmem:[#allocation9 + $0xf8] sm:$0xff]
    %v411 = vperm.slane %v161, 0
    %v412 = vperm.slane %v161, 1
    %415 = vmatpush.msra.mxu0 %v408
    %416 = vmatpush.msra.mxu0 %v406
    %417 = vmatpush.msra.mxu0 %v404
    %418 = vmatpush.msra.mxu0 %v402
    %419 = vmatpush.msra.mxu0 %v400
    %420 = vmatpush.msra.mxu0 %v398
    %421 = vmatpush.msra.mxu0 %v396
    %422 = vmatpush.msra.mxu0 %v394
    %423 = vmatpush.msra.mxu0 %v392
    %424 = vmatpush.msra.mxu0 %v390
    %425 = vmatpush.msra.mxu0 %v388
    %426 = vmatpush.msra.mxu0 %v386
    %427 = vmatpush.msra.mxu0 %v384
    %428 = vmatpush.msra.mxu0 %v382
    %429 = vmatpush.msra.mxu0 %v380
    %430 = vmatpush.msra.mxu0 %v378
    %431 = vmatmul.f32.gmra.mxu0 %v274
    %v432 = vpop.f32.mrf.mxu0
    %v433 = vadd.f32 %v411, %v432
    %434 = vdwg.mxu0
    %435 = vmatpush.msra.mxu0 %v409
    %436 = vmatpush.msra.mxu0 %v407
    %437 = vmatpush.msra.mxu0 %v405
    %438 = vmatpush.msra.mxu0 %v403
    %439 = vmatpush.msra.mxu0 %v401
    %440 = vmatpush.msra.mxu0 %v399
    %441 = vmatpush.msra.mxu0 %v397
    %442 = vmatpush.msra.mxu0 %v395
    %443 = vmatpush.msra.mxu0 %v393
    %444 = vmatpush.msra.mxu0 %v391
    %445 = vmatpush.msra.mxu0 %v389
    %446 = vmatpush.msra.mxu0 %v387
    %447 = vmatpush.msra.mxu0 %v385
    %448 = vmatpush.msra.mxu0 %v383
    %449 = vmatpush.msra.mxu0 %v381
    %450 = vmatpush.msra.mxu0 %v379
    %451 = vmatmul.f32.gmra.mxu0 %v274
    %v452 = vpop.f32.mrf.mxu0
    %v453 = vadd.f32 %v412, %v452
    %454 = vdwg.mxu0
    %v455 = vmul.f32 %v453, 0.5
    %v456 = vmul.f32 %v455, 1.442695
    %v457 = vpow.pop %v456
    %v458 = vmul.f32 %v149, %v457
    %v459 = vadd.f32 %v433, %v458
    %v460 = vld [vmem:[#allocation10] sm:$0xff]
    %v461 = vld [vmem:[#allocation10 + $0x8] sm:$0xff]
    %v462 = vld [vmem:[#allocation10 + $0x10] sm:$0xff]
    %v463 = vld [vmem:[#allocation10 + $0x18] sm:$0xff]
    %v464 = vld [vmem:[#allocation10 + $0x20] sm:$0xff]
    %v465 = vld [vmem:[#allocation10 + $0x28] sm:$0xff]
    %v466 = vld [vmem:[#allocation10 + $0x30] sm:$0xff]
    %v467 = vld [vmem:[#allocation10 + $0x38] sm:$0xff]
    %v468 = vld [vmem:[#allocation10 + $0x40] sm:$0xff]
    %v469 = vld [vmem:[#allocation10 + $0x48] sm:$0xff]
    %v470 = vld [vmem:[#allocation10 + $0x50] sm:$0xff]
    %v471 = vld [vmem:[#allocation10 + $0x58] sm:$0xff]
    %v472 = vld [vmem:[#allocation10 + $0x60] sm:$0xff]
    %v473 = vld [vmem:[#allocation10 + $0x68] sm:$0xff]
    %v474 = vld [vmem:[#allocation10 + $0x70] sm:$0xff]
    %v475 = vld [vmem:[#allocation10 + $0x78] sm:$0xff]
    %v476 = vld [vmem:[#allocation10 + $0x80] sm:$0xff]
    %v477 = vld [vmem:[#allocation10 + $0x88] sm:$0xff]
    %v478 = vld [vmem:[#allocation10 + $0x90] sm:$0xff]
    %v479 = vld [vmem:[#allocation10 + $0x98] sm:$0xff]
    %v480 = vld [vmem:[#allocation10 + $0xa0] sm:$0xff]
    %v481 = vld [vmem:[#allocation10 + $0xa8] sm:$0xff]
    %v482 = vld [vmem:[#allocation10 + $0xb0] sm:$0xff]
    %v483 = vld [vmem:[#allocation10 + $0xb8] sm:$0xff]
    %v484 = vld [vmem:[#allocation10 + $0xc0] sm:$0xff]
    %v485 = vld [vmem:[#allocation10 + $0xc8] sm:$0xff]
    %v486 = vld [vmem:[#allocation10 + $0xd0] sm:$0xff]
    %v487 = vld [vmem:[#allocation10 + $0xd8] sm:$0xff]
    %v488 = vld [vmem:[#allocation10 + $0xe0] sm:$0xff]
    %v489 = vld [vmem:[#allocation10 + $0xe8] sm:$0xff]
    %v490 = vld [vmem:[#allocation10 + $0xf0] sm:$0xff]
    %v491 = vld [vmem:[#allocation10 + $0xf8] sm:$0xff]
    %492 = vmatpush.msra.mxu0 %v491
    %493 = vmatpush.msra.mxu0 %v490
    %494 = vmatpush.msra.mxu0 %v489
    %495 = vmatpush.msra.mxu0 %v488
    %496 = vmatpush.msra.mxu0 %v487
    %497 = vmatpush.msra.mxu0 %v486
    %498 = vmatpush.msra.mxu0 %v485
    %499 = vmatpush.msra.mxu0 %v484
    %500 = vmatpush.msra.mxu0 %v483
    %501 = vmatpush.msra.mxu0 %v482
    %502 = vmatpush.msra.mxu0 %v481
    %503 = vmatpush.msra.mxu0 %v480
    %504 = vmatpush.msra.mxu0 %v479
    %505 = vmatpush.msra.mxu0 %v478
    %506 = vmatpush.msra.mxu0 %v477
    %507 = vmatpush.msra.mxu0 %v476
    %508 = vmatmul.f32.gmra.mxu0 %v148
    %v509 = vpop.f32.mrf.mxu0
    %v510 = vadd.f32 0.0, %v509
    %511 = vdwg.mxu0
    %512 = vmatpush.msra.mxu0 %v475
    %513 = vmatpush.msra.mxu0 %v474
    %514 = vmatpush.msra.mxu0 %v473
    %515 = vmatpush.msra.mxu0 %v472
    %516 = vmatpush.msra.mxu0 %v471
    %517 = vmatpush.msra.mxu0 %v470
    %518 = vmatpush.msra.mxu0 %v469
    %519 = vmatpush.msra.mxu0 %v468
    %520 = vmatpush.msra.mxu0 %v467
    %521 = vmatpush.msra.mxu0 %v466
    %522 = vmatpush.msra.mxu0 %v465
    %523 = vmatpush.msra.mxu0 %v464
    %524 = vmatpush.msra.mxu0 %v463
    %525 = vmatpush.msra.mxu0 %v462
    %526 = vmatpush.msra.mxu0 %v461
    %527 = vmatpush.msra.mxu0 %v460
    %528 = vmatmul.f32.gmra.mxu0 %v459
    %v529 = vpop.f32.mrf.mxu0
    %v530 = vadd.f32 %v510, %v529
    %531 = vdwg.mxu0
    %v532 = vadd.f32 %v530, %v157
    %v533 = vmax.f32 %v532, 0.0
    %v534 = vrot.slane %v533, 4
    %v535 = vadd.f32 %v533, %v534
    %v536 = vrot.slane %v535, 2
    %v537 = vadd.f32 %v535, %v536
    %v538 = vrot.slane %v537, 1
    %v539 = vadd.f32 %v537, %v538
    %v540 = vmul.f32 %v539, %v213
    %v541 = vsub.f32 %v533, %v540
    %v542 = vmul.f32 %v541, %v541
    %v543 = vrot.slane %v542, 4
    %v544 = vadd.f32 %v542, %v543
    %v545 = vrot.slane %v544, 2
    %v546 = vadd.f32 %v544, %v545
    %v547 = vrot.slane %v546, 1
    %v548 = vadd.f32 %v546, %v547
    %v549 = vmul.f32 %v548, %v213
    %v550 = vmul.f32 %v158, %v541
    %v551 = vadd.f32 %v549, 1e-05
    %v552 = vrsqrt.pop %v551
    %v553 = vmul.f32 %v552, %v551
    %v554 = vmul.f32 %v553, %v552
    %v555 = vmul.f32 0.5, %v554
    %v556 = vsub.f32 1.5, %v555
    %v557 = vmul.f32 %v552, %v556
    %vm558 = vweird.f32 %v551
    %vm559 = vweird.f32 %v552
    %vm560 = vmor %vm558, %vm559
    %v561 = vsel %vm560, %v552, %v557
    %v562 = vmul.f32 %v550, %v561
    %v563 = vadd.f32 %v562, %v159
    %v564 = vld [vmem:[#allocation12] sm:$0xff]
    %v565 = vld [vmem:[#allocation12 + $0x8] sm:$0xff]
    %v566 = vld [vmem:[#allocation12 + $0x10] sm:$0xff]
    %v567 = vld [vmem:[#allocation12 + $0x18] sm:$0xff]
    %v568 = vld [vmem:[#allocation12 + $0x20] sm:$0xff]
    %v569 = vld [vmem:[#allocation12 + $0x28] sm:$0xff]
    %v570 = vld [vmem:[#allocation12 + $0x30] sm:$0xff]
    %v571 = vld [vmem:[#allocation12 + $0x38] sm:$0xff]
    %v572 = vld [vmem:[#allocation12 + $0x40] sm:$0xff]
    %v573 = vld [vmem:[#allocation12 + $0x48] sm:$0xff]
    %v574 = vld [vmem:[#allocation12 + $0x50] sm:$0xff]
    %v575 = vld [vmem:[#allocation12 + $0x58] sm:$0xff]
    %v576 = vld [vmem:[#allocation12 + $0x60] sm:$0xff]
    %v577 = vld [vmem:[#allocation12 + $0x68] sm:$0xff]
    %v578 = vld [vmem:[#allocation12 + $0x70] sm:$0xff]
    %v579 = vld [vmem:[#allocation12 + $0x78] sm:$0xff]
    %580 = vmatpush.msra.mxu0 %v579
    %581 = vmatpush.msra.mxu0 %v578
    %582 = vmatpush.msra.mxu0 %v577
    %583 = vmatpush.msra.mxu0 %v576
    %584 = vmatpush.msra.mxu0 %v575
    %585 = vmatpush.msra.mxu0 %v574
    %586 = vmatpush.msra.mxu0 %v573
    %587 = vmatpush.msra.mxu0 %v572
    %588 = vmatpush.msra.mxu0 %v571
    %589 = vmatpush.msra.mxu0 %v570
    %590 = vmatpush.msra.mxu0 %v569
    %591 = vmatpush.msra.mxu0 %v568
    %592 = vmatpush.msra.mxu0 %v567
    %593 = vmatpush.msra.mxu0 %v566
    %594 = vmatpush.msra.mxu0 %v565
    %595 = vmatpush.msra.mxu0 %v564
    %596 = vmatmul.f32.gmra.mxu0 %v563
    %v597 = vpop.f32.mrf.mxu0
    %v598 = vadd.f32 %v163, %v597
    %599 = vdwg.mxu0
    %600 = vst [vmem:[%s11] sm:$0xff] %v598
    %601 = vst [vmem:[%s11 + $0x8] sm:$0xff] %v433
    %602 = vst [vmem:[%s11 + $0x10] sm:$0xff] %v453
    %603 = vst [vmem:[%s11 + $0x18] sm:$0xff] %v376
    // Predicated region
    $region74: #{cvae_forward.1} parent=1 // pred_check
      _
    $region75: #{cvae_forward.1} parent=1 // pred_check_branch
      %605 = sbr.rel (0) target = $region77
    $region76: #{cvae_forward.1} parent=1 // pred_region
      _
    $region77: #{cvae_forward.1} parent=1 // pred_fallthru
      _
    // Predicated region
    $region78: #{cvae_forward.1} parent=1 // pred_check
      _
    $region79: #{cvae_forward.1} parent=1 // pred_check_branch
      %607 = sbr.rel (0) target = $region81
    $region80: #{cvae_forward.1} parent=1 // pred_region
      _
    $region81: #{cvae_forward.1} parent=1 // pred_fallthru
      _
    %608 = vsyncpa [#allocation3], 1
    %609 = vsyncpa [#allocation5], 1
    %610 = vsyncpa [#allocation8], 1
    %611 = vsyncpa [#allocation11], 1

</llo_original>
